<compile_context>
chip_gen: v5e
topology: v5e:2x2
jax: 0.10.0
libtpu: 0.0.40
codegen_flags: <defaults>
</compile_context>

<pallas_src>
import jax
import jax.numpy as jnp
from jax.experimental import pallas as pl
from jax.experimental.pallas import tpu as pltpu

LENGTH = 10
CIN, COUT, K = 8, 32, 3
T = LENGTH - K + 1          # 8 conv output positions
FLAT = COUT * T             # 256 = fc1 input size (torch flatten of (B, 32, T))
UNITS = 128
XDIM = CIN * LENGTH         # 80 = flattened raw input width
TB_DEFAULT = 2048           # batch tile (multiple of 8); ~8-10 MB VMEM working set


def _round_up(n, m):
    return (n + m - 1) // m * m


def _fused_forward_kernel(x_ref, wc_ref, bc_ref, w1_ref, b1_ref,
                          w2_ref, b2_ref, w3_ref, b3_ref, out_ref):
    cd = wc_ref.dtype                                   # bf16 MXU inputs, f32 accumulation
    x = x_ref[...].astype(cd)                           # in-kernel cast (VPU), no wrapper pass
    # conv1d folded into a dense banded matmul + torch-order flatten; bf16 epilogue
    h = jnp.dot(x, wc_ref[...], preferred_element_type=jnp.float32).astype(cd)
    h = jnp.maximum(h + bc_ref[...], 0.0)
    # fc1 + ReLU
    h = jnp.dot(h, w1_ref[...], preferred_element_type=jnp.float32).astype(cd)
    h = jnp.maximum(h + b1_ref[...], 0.0)
    # fc2 + ReLU
    h = jnp.dot(h, w2_ref[...], preferred_element_type=jnp.float32).astype(cd)
    h = jnp.maximum(h + b2_ref[...], 0.0)
    # fc3: real (128, 1) column -> (tb, 1) f32 output, no lane padding written to HBM
    out_ref[...] = jnp.dot(h, w3_ref[...],
                           preferred_element_type=jnp.float32) + b3_ref[...]


def init_params(key):
    """Deterministic synthetic parameters, PyTorch-shaped (Linear weight = (out, in))."""
    ks = jax.random.split(key, 8)

    def u(k, shape, fan_in):
        bound = 1.0 / jnp.sqrt(jnp.float32(fan_in))
        return jax.random.uniform(k, shape, jnp.float32, -bound, bound)

    return {
        "conv_w": u(ks[0], (COUT, CIN, K), CIN * K),   # nn.Conv1d(8, 32, 3).weight
        "conv_b": u(ks[1], (COUT,), CIN * K),
        "fc1_w": u(ks[2], (UNITS, FLAT), FLAT),        # nn.Linear(256, 128)
        "fc1_b": u(ks[3], (UNITS,), FLAT),
        "fc2_w": u(ks[4], (UNITS, UNITS), UNITS),      # nn.Linear(128, 128)
        "fc2_b": u(ks[5], (UNITS,), UNITS),
        "fc3_w": u(ks[6], (1, UNITS), UNITS),          # nn.Linear(128, 1)
        "fc3_b": u(ks[7], (1,), UNITS),
    }


def prepare_kernel_params(p, compute_dtype=jnp.bfloat16):
    """One-time parameter re-layout (hoisted out of the per-call forward path)."""
    cw = p["conv_w"].astype(jnp.float32)
    # W_eff[ci*L + l, co*T + t] = conv_w[co, ci, l - t]   (banded, zero elsewhere)
    w_eff = jnp.zeros((XDIM, FLAT), jnp.float32)
    for k in range(K):
        band = jnp.eye(LENGTH, T, -k, dtype=jnp.float32)   # band[l, t] = 1 iff l == t + k
        w_eff = w_eff + jnp.einsum("oc,lt->clot", cw[:, :, k], band).reshape(XDIM, FLAT)
    bc = jnp.repeat(p["conv_b"].astype(jnp.float32), T).reshape(1, FLAT)  # bias at col co*T+t
    # bf16 epilogue biases (v6e/v7x bf16 VALU); keep f32 here if targeting v5e only.
    return {
        "wc": w_eff.astype(compute_dtype),
        "bc": bc.astype(compute_dtype),
        "w1": p["fc1_w"].T.astype(compute_dtype),            # (256, 128)
        "b1": p["fc1_b"].reshape(1, UNITS).astype(compute_dtype),
        "w2": p["fc2_w"].T.astype(compute_dtype),            # (128, 128)
        "b2": p["fc2_b"].reshape(1, UNITS).astype(compute_dtype),
        "w3": p["fc3_w"].T.astype(compute_dtype),            # (128, 1) real column, no pad
        "b3": p["fc3_b"].reshape(1, 1).astype(jnp.float32),  # final bias stays f32
    }


def interaction_model_forward(x, kp, *, tile_b=TB_DEFAULT):
    B = x.shape[0]
    x2d = x.reshape(B, XDIM)                  # free row-major collapse; cast done in-kernel
    b8 = _round_up(B, 8)
    tb = max(8, min(_round_up(tile_b, 8), b8))
    # v7x megacore: guarantee >= 2 grid steps for large batches so the "parallel" batch
    # axis shards across both TensorCores (no-op on single-TC v5e/v6e).
    if tb >= b8 and b8 >= 256:
        tb = _round_up(pl.cdiv(b8, 2), 8)
    b_pad = _round_up(B, tb)
    if b_pad != B:                            # skipped whenever tb divides the batch
        x2d = jnp.pad(x2d, ((0, b_pad - B), (0, 0)))
    n_steps = b_pad // tb

    weights = (kp["wc"], kp["bc"], kp["w1"], kp["b1"],
               kp["w2"], kp["b2"], kp["w3"], kp["b3"])
    in_specs = [pl.BlockSpec((tb, XDIM), lambda i: (i, 0))]          # x: new block per step
    # constant index maps -> fetched once, VMEM-resident across all grid steps
    in_specs += [pl.BlockSpec(w.shape, lambda i: (0, 0)) for w in weights]

    flops = 2 * b_pad * (XDIM * FLAT + FLAT * UNITS + UNITS * UNITS + UNITS * 1)
    bytes_accessed = (x2d.size * x2d.dtype.itemsize
                      + b_pad * 1 * 4
                      + sum(int(w.size) * w.dtype.itemsize for w in weights))

    out = pl.pallas_call(
        _fused_forward_kernel,
        out_shape=jax.ShapeDtypeStruct((b_pad, 1), jnp.float32),
        grid=(n_steps,),
        in_specs=in_specs,
        out_specs=pl.BlockSpec((tb, 1), lambda i: (i, 0)),
        compiler_params=pltpu.CompilerParams(
            dimension_semantics=("parallel",),
            # 32 MiB: above v5e's 16 MiB scoped default, well under v7x's 64 MiB physical.
            vmem_limit_bytes=32 * 1024 * 1024),
        cost_estimate=pl.CostEstimate(flops=flops, transcendentals=0,
                                      bytes_accessed=bytes_accessed),
    )(x2d, *weights)
    return out[:B]                                         # (B, 1) like fc3


def reference_forward(x, p):
    """Pure-JAX f32 reference replicating the PyTorch forward exactly."""
    conv = jnp.stack(
        [jnp.einsum("bck,ock->bo", x[:, :, t:t + K], p["conv_w"]) for t in range(T)],
        axis=-1) + p["conv_b"][None, :, None]              # (B, 32, T) NCW
    h = jnp.maximum(conv.reshape(x.shape[0], -1), 0.0)     # relu(flatten)
    h = jnp.maximum(h @ p["fc1_w"].T + p["fc1_b"], 0.0)
    h = jnp.maximum(h @ p["fc2_w"].T + p["fc2_b"], 0.0)
    return h @ p["fc3_w"].T + p["fc3_b"]


if __name__ == "__main__":
    key = jax.random.PRNGKey(0)
    k_param, k_x1, k_x2, k_x3 = jax.random.split(key, 4)
    params = init_params(k_param)
    kparams = prepare_kernel_params(params)                # one-time re-layout (hoisted)

    fwd = jax.jit(interaction_model_forward, static_argnames=("tile_b",))

    # Case 1: tiny batch, single grid step.
    x1 = jax.random.normal(k_x1, (4, CIN, LENGTH), jnp.float32)
    out1 = jax.block_until_ready(fwd(x1, kparams))
    ref1 = reference_forward(x1, params)
    assert out1.shape == (4, 1), out1.shape
    # tolerance reflects bf16 MXU inputs / bf16 epilogues with f32 accumulation
    assert jnp.allclose(out1, ref1, rtol=5e-2, atol=5e-2)

    # Case 2: exercises the batch-tiling + padding path (B=40, TB=16 -> 3 steps).
    x2 = jax.random.normal(k_x2, (40, CIN, LENGTH), jnp.float32)
    out2 = jax.block_until_ready(fwd(x2, kparams, tile_b=16))
    ref2 = reference_forward(x2, params)
    assert out2.shape == (40, 1), out2.shape
    assert jnp.allclose(out2, ref2, rtol=5e-2, atol=5e-2)

    # Case 3: exercises the >=2-grid-step split (B=512 -> tb=256, 2 steps, no padding).
    x3 = jax.random.normal(k_x3, (512, CIN, LENGTH), jnp.float32)
    out3 = jax.block_until_ready(fwd(x3, kparams))
    ref3 = reference_forward(x3, params)
    assert out3.shape == (512, 1), out3.shape
    assert jnp.allclose(out3, ref3, rtol=5e-2, atol=5e-2)

    print("KERNEL_OK")
</pallas_src>

<mosaic_0001>
module attributes {stable_mosaic.version = 11 : i64} {
  func.func @_fused_forward_kernel(%arg0: i32, %arg1: memref<8x80xf32, #tpu.memory_space<vmem>>, %arg2: memref<80x256xbf16, #tpu.memory_space<vmem>>, %arg3: memref<1x256xbf16, #tpu.memory_space<vmem>>, %arg4: memref<256x128xbf16, #tpu.memory_space<vmem>>, %arg5: memref<1x128xbf16, #tpu.memory_space<vmem>>, %arg6: memref<128x128xbf16, #tpu.memory_space<vmem>>, %arg7: memref<1x128xbf16, #tpu.memory_space<vmem>>, %arg8: memref<128x1xbf16, #tpu.memory_space<vmem>>, %arg9: memref<1x1xf32, #tpu.memory_space<vmem>>, %arg10: memref<8x1xf32, #tpu.memory_space<vmem>>) attributes {dimension_semantics = [#tpu.dimension_semantics<parallel>], iteration_bounds = array<i64: 1>, scalar_prefetch = 0 : i64, scratch_operands = 0 : i64, tpu.core_type = #tpu.core_type<tc>, window_params = [{transform_indices = @transform_0, window_bounds = array<i64: 8, 80>}, {pipeline_mode = #tpu.pipeline_mode<synchronous>, transform_indices = @transform_1, window_bounds = array<i64: 80, 256>}, {pipeline_mode = #tpu.pipeline_mode<synchronous>, transform_indices = @transform_2, window_bounds = array<i64: 1, 256>}, {pipeline_mode = #tpu.pipeline_mode<synchronous>, transform_indices = @transform_3, window_bounds = array<i64: 256, 128>}, {pipeline_mode = #tpu.pipeline_mode<synchronous>, transform_indices = @transform_4, window_bounds = array<i64: 1, 128>}, {pipeline_mode = #tpu.pipeline_mode<synchronous>, transform_indices = @transform_5, window_bounds = array<i64: 128, 128>}, {pipeline_mode = #tpu.pipeline_mode<synchronous>, transform_indices = @transform_6, window_bounds = array<i64: 1, 128>}, {pipeline_mode = #tpu.pipeline_mode<synchronous>, transform_indices = @transform_7, window_bounds = array<i64: 128, 1>}, {pipeline_mode = #tpu.pipeline_mode<synchronous>, transform_indices = @transform_8, window_bounds = array<i64: 1, 1>}, {transform_indices = @transform_9, window_bounds = array<i64: 8, 1>}]} {
    %c0 = arith.constant 0 : index
    %c0_0 = arith.constant 0 : index
    %0 = vector.load %arg1[%c0, %c0_0] : memref<8x80xf32, #tpu.memory_space<vmem>>, vector<8x80xf32>
    %1 = arith.truncf %0 : vector<8x80xf32> to vector<8x80xbf16>
    %c0_1 = arith.constant 0 : index
    %c0_2 = arith.constant 0 : index
    %2 = vector.load %arg2[%c0_1, %c0_2] : memref<80x256xbf16, #tpu.memory_space<vmem>>, vector<80x256xbf16>
    %cst = arith.constant dense<0.000000e+00> : vector<8x256xf32>
    %3 = tpu.matmul %1, %2, %cst {dimension_numbers = #tpu.dot_dimension_numbers<[1], [0], [0], [1], [0, 0, 1, 1], [], []>} : vector<8x80xbf16>, vector<80x256xbf16>, vector<8x256xf32> -> vector<8x256xf32>
    %4 = arith.truncf %3 : vector<8x256xf32> to vector<8x256xbf16>
    %c0_3 = arith.constant 0 : index
    %c0_4 = arith.constant 0 : index
    %5 = vector.load %arg3[%c0_3, %c0_4] : memref<1x256xbf16, #tpu.memory_space<vmem>>, vector<1x256xbf16>
    %6 = vector.broadcast %5 : vector<1x256xbf16> to vector<8x256xbf16>
    %7 = arith.addf %4, %6 : vector<8x256xbf16>
    %cst_5 = arith.constant 0.000000e+00 : bf16
    %8 = vector.broadcast %cst_5 : bf16 to vector<8x256xbf16>
    %9 = arith.maximumf %7, %8 : vector<8x256xbf16>
    %c0_6 = arith.constant 0 : index
    %c0_7 = arith.constant 0 : index
    %10 = vector.load %arg4[%c0_6, %c0_7] : memref<256x128xbf16, #tpu.memory_space<vmem>>, vector<256x128xbf16>
    %cst_8 = arith.constant dense<0.000000e+00> : vector<8x128xf32>
    %11 = tpu.matmul %9, %10, %cst_8 {dimension_numbers = #tpu.dot_dimension_numbers<[1], [0], [0], [1], [0, 0, 1, 1], [], []>} : vector<8x256xbf16>, vector<256x128xbf16>, vector<8x128xf32> -> vector<8x128xf32>
    %12 = arith.truncf %11 : vector<8x128xf32> to vector<8x128xbf16>
    %c0_9 = arith.constant 0 : index
    %c0_10 = arith.constant 0 : index
    %13 = vector.load %arg5[%c0_9, %c0_10] : memref<1x128xbf16, #tpu.memory_space<vmem>>, vector<1x128xbf16>
    %14 = vector.broadcast %13 : vector<1x128xbf16> to vector<8x128xbf16>
    %15 = arith.addf %12, %14 : vector<8x128xbf16>
    %cst_11 = arith.constant 0.000000e+00 : bf16
    %16 = vector.broadcast %cst_11 : bf16 to vector<8x128xbf16>
    %17 = arith.maximumf %15, %16 : vector<8x128xbf16>
    %c0_12 = arith.constant 0 : index
    %c0_13 = arith.constant 0 : index
    %18 = vector.load %arg6[%c0_12, %c0_13] : memref<128x128xbf16, #tpu.memory_space<vmem>>, vector<128x128xbf16>
    %cst_14 = arith.constant dense<0.000000e+00> : vector<8x128xf32>
    %19 = tpu.matmul %17, %18, %cst_14 {dimension_numbers = #tpu.dot_dimension_numbers<[1], [0], [0], [1], [0, 0, 1, 1], [], []>} : vector<8x128xbf16>, vector<128x128xbf16>, vector<8x128xf32> -> vector<8x128xf32>
    %20 = arith.truncf %19 : vector<8x128xf32> to vector<8x128xbf16>
    %c0_15 = arith.constant 0 : index
    %c0_16 = arith.constant 0 : index
    %21 = vector.load %arg7[%c0_15, %c0_16] : memref<1x128xbf16, #tpu.memory_space<vmem>>, vector<1x128xbf16>
    %22 = vector.broadcast %21 : vector<1x128xbf16> to vector<8x128xbf16>
    %23 = arith.addf %20, %22 : vector<8x128xbf16>
    %cst_17 = arith.constant 0.000000e+00 : bf16
    %24 = vector.broadcast %cst_17 : bf16 to vector<8x128xbf16>
    %25 = arith.maximumf %23, %24 : vector<8x128xbf16>
    %c0_18 = arith.constant 0 : index
    %c0_19 = arith.constant 0 : index
    %26 = vector.load %arg8[%c0_18, %c0_19] : memref<128x1xbf16, #tpu.memory_space<vmem>>, vector<128x1xbf16>
    %cst_20 = arith.constant dense<0.000000e+00> : vector<8x1xf32>
    %27 = tpu.matmul %25, %26, %cst_20 {dimension_numbers = #tpu.dot_dimension_numbers<[1], [0], [0], [1], [0, 0, 1, 1], [], []>} : vector<8x128xbf16>, vector<128x1xbf16>, vector<8x1xf32> -> vector<8x1xf32>
    %c0_21 = arith.constant 0 : index
    %c0_22 = arith.constant 0 : index
    %28 = vector.load %arg9[%c0_21, %c0_22] : memref<1x1xf32, #tpu.memory_space<vmem>>, vector<1x1xf32>
    %29 = vector.broadcast %28 : vector<1x1xf32> to vector<8x1xf32>
    %30 = arith.addf %27, %29 : vector<8x1xf32>
    %c0_23 = arith.constant 0 : index
    %c0_24 = arith.constant 0 : index
    %31 = vector.load %arg10[%c0_23, %c0_24] : memref<8x1xf32, #tpu.memory_space<vmem>>, vector<8x1xf32>
    tpu.vector_store %arg10[%c0_23, %c0_24], %30 {strides = array<i32>} : memref<8x1xf32, #tpu.memory_space<vmem>>, vector<8x1xf32>,
    return
  }
  func.func @transform_0(%arg0: i32) -> (i32, i32) {
    %c0_i32 = arith.constant 0 : i32
    %c0_i32_0 = arith.constant 0 : i32
    return %arg0, %c0_i32 : i32, i32
  }
  func.func @transform_1(%arg0: i32) -> (i32, i32) {
    %c0_i32 = arith.constant 0 : i32
    %c0_i32_0 = arith.constant 0 : i32
    %c0_i32_1 = arith.constant 0 : i32
    return %c0_i32, %c0_i32_0 : i32, i32
  }
  func.func @transform_2(%arg0: i32) -> (i32, i32) {
    %c0_i32 = arith.constant 0 : i32
    %c0_i32_0 = arith.constant 0 : i32
    %c0_i32_1 = arith.constant 0 : i32
    return %c0_i32, %c0_i32_0 : i32, i32
  }
  func.func @transform_3(%arg0: i32) -> (i32, i32) {
    %c0_i32 = arith.constant 0 : i32
    %c0_i32_0 = arith.constant 0 : i32
    %c0_i32_1 = arith.constant 0 : i32
    return %c0_i32, %c0_i32_0 : i32, i32
  }
  func.func @transform_4(%arg0: i32) -> (i32, i32) {
    %c0_i32 = arith.constant 0 : i32
    %c0_i32_0 = arith.constant 0 : i32
    %c0_i32_1 = arith.constant 0 : i32
    return %c0_i32, %c0_i32_0 : i32, i32
  }
  func.func @transform_5(%arg0: i32) -> (i32, i32) {
    %c0_i32 = arith.constant 0 : i32
    %c0_i32_0 = arith.constant 0 : i32
    %c0_i32_1 = arith.constant 0 : i32
    return %c0_i32, %c0_i32_0 : i32, i32
  }
  func.func @transform_6(%arg0: i32) -> (i32, i32) {
    %c0_i32 = arith.constant 0 : i32
    %c0_i32_0 = arith.constant 0 : i32
    %c0_i32_1 = arith.constant 0 : i32
    return %c0_i32, %c0_i32_0 : i32, i32
  }
  func.func @transform_7(%arg0: i32) -> (i32, i32) {
    %c0_i32 = arith.constant 0 : i32
    %c0_i32_0 = arith.constant 0 : i32
    %c0_i32_1 = arith.constant 0 : i32
    return %c0_i32, %c0_i32_0 : i32, i32
  }
  func.func @transform_8(%arg0: i32) -> (i32, i32) {
    %c0_i32 = arith.constant 0 : i32
    %c0_i32_0 = arith.constant 0 : i32
    %c0_i32_1 = arith.constant 0 : i32
    return %c0_i32, %c0_i32_0 : i32, i32
  }
  func.func @transform_9(%arg0: i32) -> (i32, i32) {
    %c0_i32 = arith.constant 0 : i32
    %c0_i32_0 = arith.constant 0 : i32
    return %arg0, %c0_i32 : i32, i32
  }
}

</mosaic_0001>

<llo_original>
// kernel: interaction_model_forward.1
$region0: #{interaction_model_forward.1}
  #allocation0 [shape = 'u32[]', space=smem, size = 0x4, offset = 0x4, fixed_abs, tag = 'smem constant byte address 0x4 - core index']
  #allocation1 [shape = 'u32[72,128]{1,0:T(1,128)}', space=vmem, size = 0x9000, scoped, tag = 'internal scratch']
  #allocation2 [shape = 'f32[1,1]{1,0:T(1,128)S(1)}', space=vmem, size = 0x200, scoped, tag = 'scoped memory for interaction_model_forward.1']
  %s0 = inlined_call_operand.vmem [shape: f32[8,80], index: 0, kind: input, shape index: {}]
  %s1 = inlined_call_operand.vmem [shape: bf16[80,256], index: 1, kind: input, shape index: {}]
  %s2 = inlined_call_operand.vmem [shape: bf16[1,256], index: 2, kind: input, shape index: {}]
  %s3 = inlined_call_operand.hbm [shape: bf16[256,128], index: 3, kind: input, shape index: {}]
  %s4 = inlined_call_operand.vmem [shape: bf16[1,128], index: 4, kind: input, shape index: {}]
  %s5 = inlined_call_operand.hbm [shape: bf16[128,128], index: 5, kind: input, shape index: {}]
  %s6 = inlined_call_operand.vmem [shape: bf16[1,128], index: 6, kind: input, shape index: {}]
  %s7 = inlined_call_operand.vmem [shape: bf16[128,1], index: 7, kind: input, shape index: {}]
  %s8 = inlined_call_operand.<no memory space> [shape: f32[1,1], index: 8, kind: input, shape index: {}]
  %s9 = inlined_call_operand.vmem [shape: f32[8,1], index: 9, kind: output, shape index: {}]
  %s10 = sld [smem:[#allocation0]]
  $region54: #{interaction_model_forward.1} parent=0
    _
  %s12 = ssub.s32 1, %s10
  %s13 = scalar_select 0, %s12, %s10
  %v14 = vstv %s8
  %15 = vst [vmem:[#allocation2] sm:$0x1] %v14
  $region1: #{interaction_model_forward.1} parent=0
    #allocation3 [shape = 'u8[65536]{0}', space=vmem, size = 0x10000, scoped, tag = 'input window, operand 3, single buffered']
    #allocation4 [shape = 's32[1]{0}', space=sflag, size = 0x4, scoped, tag = 'scoped memory for interaction_model_forward.1']
    #allocation5 [shape = 'u8[32768]{0}', space=vmem, size = 0x8000, scoped, tag = 'input window, operand 5, single buffered']
    #allocation6 [shape = 's32[1]{0}', space=sflag, size = 0x4, scoped, tag = 'scoped memory for interaction_model_forward.1']
    %16 = vsyncpa [#allocation4], 0
    %17 = vsyncpa [#allocation6], 0
    // Predicated region
    $region2: #{interaction_model_forward.1} parent=1 // pred_check
      _
    $region3: #{interaction_model_forward.1} parent=1 // pred_check_branch
      %19 = sbr.rel (0) target = $region5
    $region4: #{interaction_model_forward.1} parent=1 // pred_region
      _
    $region5: #{interaction_model_forward.1} parent=1 // pred_fallthru
      _
    // Predicated region
    $region6: #{interaction_model_forward.1} parent=1 // pred_check
      _
    $region7: #{interaction_model_forward.1} parent=1 // pred_check_branch
      %21 = sbr.rel (0) target = $region9
    $region8: #{interaction_model_forward.1} parent=1 // pred_region
      _
    $region9: #{interaction_model_forward.1} parent=1 // pred_fallthru
      _
    // Predicated region
    $region10: #{interaction_model_forward.1} parent=1 // pred_check
      _
    $region11: #{interaction_model_forward.1} parent=1 // pred_check_branch
      %23 = sbr.rel (0) target = $region13
    $region12: #{interaction_model_forward.1} parent=1 // pred_region
      _
    $region13: #{interaction_model_forward.1} parent=1 // pred_fallthru
      _
    // Predicated region
    $region14: #{interaction_model_forward.1} parent=1 // pred_check
      _
    $region15: #{interaction_model_forward.1} parent=1 // pred_check_branch
      %25 = sbr.rel (0) target = $region17
    $region16: #{interaction_model_forward.1} parent=1 // pred_region
      %27 = vsyncadd [#allocation4], 0
      %s28 = sshll.u32 %s3, 4
      %s29 = int_to_ptr.hbm [resolvable:$true] %s28
      %s30 = sshll.u32 [#allocation3], 4
      %s31 = int_to_ptr.vmem [resolvable:$true] %s30
      %36 = dma.hbm_to_vmem [thread:$0]  %s29, 2048, %s31, [#allocation4], 64, 64, 4
    $region17: #{interaction_model_forward.1} parent=1 // pred_fallthru
      _
    // Predicated region
    $region18: #{interaction_model_forward.1} parent=1 // pred_check
      _
    $region19: #{interaction_model_forward.1} parent=1 // pred_check_branch
      %38 = sbr.rel (0) target = $region21
    $region20: #{interaction_model_forward.1} parent=1 // pred_region
      _
    $region21: #{interaction_model_forward.1} parent=1 // pred_fallthru
      _
    // Predicated region
    $region22: #{interaction_model_forward.1} parent=1 // pred_check
      _
    $region23: #{interaction_model_forward.1} parent=1 // pred_check_branch
      %40 = sbr.rel (0) target = $region25
    $region24: #{interaction_model_forward.1} parent=1 // pred_region
      %42 = vsyncadd [#allocation6], 0
      %s43 = sshll.u32 %s5, 4
      %s44 = int_to_ptr.hbm [resolvable:$true] %s43
      %s45 = sshll.u32 [#allocation5], 4
      %s46 = int_to_ptr.vmem [resolvable:$true] %s45
      %51 = dma.hbm_to_vmem [thread:$0]  %s44, 1024, %s46, [#allocation6], 64, 64, 4
    $region25: #{interaction_model_forward.1} parent=1 // pred_fallthru
      _
    // Predicated region
    $region26: #{interaction_model_forward.1} parent=1 // pred_check
      _
    $region27: #{interaction_model_forward.1} parent=1 // pred_check_branch
      %53 = sbr.rel (0) target = $region29
    $region28: #{interaction_model_forward.1} parent=1 // pred_region
      _
    $region29: #{interaction_model_forward.1} parent=1 // pred_fallthru
      _
    // Predicated region
    $region30: #{interaction_model_forward.1} parent=1 // pred_check
      _
    $region31: #{interaction_model_forward.1} parent=1 // pred_check_branch
      %55 = sbr.rel (0) target = $region33
    $region32: #{interaction_model_forward.1} parent=1 // pred_region
      _
    $region33: #{interaction_model_forward.1} parent=1 // pred_fallthru
      _
    // Predicated region
    $region34: #{interaction_model_forward.1} parent=1 // pred_check
      _
    $region35: #{interaction_model_forward.1} parent=1 // pred_check_branch
      %57 = sbr.rel (0) target = $region37
    $region36: #{interaction_model_forward.1} parent=1 // pred_region
      _
    $region37: #{interaction_model_forward.1} parent=1 // pred_fallthru
      _
    // Predicated region
    $region38: #{interaction_model_forward.1} parent=1 // pred_check
      _
    $region39: #{interaction_model_forward.1} parent=1 // pred_check_branch
      %59 = sbr.rel (0) target = $region41
    $region40: #{interaction_model_forward.1} parent=1 // pred_region
      %61 = dma.done [#allocation4], 2048
    $region41: #{interaction_model_forward.1} parent=1 // pred_fallthru
      _
    // Predicated region
    $region42: #{interaction_model_forward.1} parent=1 // pred_check
      _
    $region43: #{interaction_model_forward.1} parent=1 // pred_check_branch
      %63 = sbr.rel (0) target = $region45
    $region44: #{interaction_model_forward.1} parent=1 // pred_region
      %65 = dma.done [#allocation6], 1024
    $region45: #{interaction_model_forward.1} parent=1 // pred_fallthru
      _
    %v67 = vld [vmem:[%s0] sm:$0xff]
    %v68 = vpack.c.bf16 %v67, %v67
    %v69 = vld [vmem:[%s1] sm:$0xff]
    %v70 = vld [vmem:[%s1 + $0x8] sm:$0xff]
    %v71 = vld [vmem:[%s1 + $0x10] sm:$0xff]
    %v72 = vld [vmem:[%s1 + $0x18] sm:$0xff]
    %v73 = vld [vmem:[%s1 + $0x20] sm:$0xff]
    %v74 = vld [vmem:[%s1 + $0x28] sm:$0xff]
    %v75 = vld [vmem:[%s1 + $0x30] sm:$0xff]
    %v76 = vld [vmem:[%s1 + $0x38] sm:$0xff]
    %v77 = vld [vmem:[%s1 + $0x40] sm:$0xff]
    %v78 = vld [vmem:[%s1 + $0x48] sm:$0xff]
    %v89 = vunpack.c.l.b16 %v69
    %v90 = vunpack.c.h.b16 %v69
    %v91 = vunpack.c.l.b16 %v70
    %v92 = vunpack.c.h.b16 %v70
    %v93 = vunpack.c.l.b16 %v71
    %v94 = vunpack.c.h.b16 %v71
    %v95 = vunpack.c.l.b16 %v72
    %v96 = vunpack.c.h.b16 %v72
    %v97 = vunpack.c.l.b16 %v73
    %v98 = vunpack.c.h.b16 %v73
    %v99 = vunpack.c.l.b16 %v74
    %v100 = vunpack.c.h.b16 %v74
    %v101 = vunpack.c.l.b16 %v75
    %v102 = vunpack.c.h.b16 %v75
    %v103 = vunpack.c.l.b16 %v76
    %v104 = vunpack.c.h.b16 %v76
    %v105 = vunpack.c.l.b16 %v77
    %v106 = vunpack.c.h.b16 %v77
    %v107 = vunpack.c.l.b16 %v78
    %v108 = vunpack.c.h.b16 %v78
    %v109 = vpack.c.b16 %v91, %v89
    %v110 = vpack.c.b16 %v92, %v90
    %v111 = vpack.c.b16 %v95, %v93
    %v112 = vpack.c.b16 %v96, %v94
    %v113 = vpack.c.b16 %v99, %v97
    %v114 = vpack.c.b16 %v100, %v98
    %v115 = vpack.c.b16 %v103, %v101
    %v116 = vpack.c.b16 %v104, %v102
    %v117 = vpack.c.b16 %v107, %v105
    %v118 = vpack.c.b16 %v108, %v106
    %vm129 = vcmask 654336
    %v131 = vsel %vm129, %v68, 0
    %133 = vmatpush.bf16.msra.mxu0 0
    %134 = vmatpush.bf16.msra.mxu0 0
    %135 = vmatpush.bf16.msra.mxu0 0
    %136 = vmatpush.bf16.msra.mxu0 %v117
    %137 = vmatpush.bf16.msra.mxu0 %v115
    %138 = vmatpush.bf16.msra.mxu0 %v113
    %139 = vmatpush.bf16.msra.mxu0 %v111
    %140 = vmatpush.bf16.msra.mxu0 %v109
    %141 = vmatmul.bf16.gmra.mxu0 %v131
    %v142 = vpop.f32.mrf.mxu0
    %v143 = vadd.f32 0.0, %v142
    %v144 = vpop.f32.mrf.mxu0
    %145 = vdwg.mxu0
    %146 = vmatpush.bf16.msra.mxu0 0
    %147 = vmatpush.bf16.msra.mxu0 0
    %148 = vmatpush.bf16.msra.mxu0 0
    %149 = vmatpush.bf16.msra.mxu0 %v118
    %150 = vmatpush.bf16.msra.mxu0 %v116
    %151 = vmatpush.bf16.msra.mxu0 %v114
    %152 = vmatpush.bf16.msra.mxu0 %v112
    %153 = vmatpush.bf16.msra.mxu0 %v110
    %154 = vmatmul.bf16.gmra.mxu0 %v131
    %v155 = vpop.f32.mrf.mxu0
    %v156 = vadd.f32 0.0, %v155
    %v157 = vpop.f32.mrf.mxu0
    %158 = vdwg.mxu0
    %v159 = vpack.c.bf16 %v156, %v143
    %v160 = vld [vmem:[%s2] sm:$0x3]
    %162 = vst [vmem:[#allocation1] ss:$9 sm:$0xff] %v160
    %v163 = vld [vmem:[#allocation1] sm:$0xff]
    %v164 = vld [vmem:[#allocation1 + $0x9] sm:$0xff]
    %v165 = vpack.i.b16 %v163, %v163
    %v167 = vperm.slane %v165, 0
    %v168 = vpack.i.b16 %v164, %v164
    %v170 = vperm.slane %v168, 0
    %v171 = vunpack.c.l.bf16 %v159
    %v172 = vunpack.c.h.bf16 %v159
    %v173 = vunpack.c.l.bf16 %v167
    %v174 = vunpack.c.l.bf16 %v170
    %v175 = vadd.f32 %v171, %v173
    %v176 = vadd.f32 %v172, %v174
    %v177 = vpack.c.bf16 %v176, %v175
    %v178 = vunpack.c.l.bf16 %v177
    %v179 = vunpack.c.h.bf16 %v177
    %v180 = vmax.f32 %v178, 0.0
    %v181 = vmax.f32 %v179, 0.0
    %v182 = vpack.c.bf16 %v180, %v180
    %v183 = vpack.c.bf16 %v181, %v181
    %v184 = vld [vmem:[#allocation3] sm:$0xf]
    %v185 = vld [vmem:[#allocation3 + $0x4] sm:$0xf]
    %v186 = vld [vmem:[#allocation3 + $0x8] sm:$0xf]
    %v187 = vld [vmem:[#allocation3 + $0xc] sm:$0xf]
    %v188 = vld [vmem:[#allocation3 + $0x10] sm:$0xf]
    %v189 = vld [vmem:[#allocation3 + $0x14] sm:$0xf]
    %v190 = vld [vmem:[#allocation3 + $0x18] sm:$0xf]
    %v191 = vld [vmem:[#allocation3 + $0x1c] sm:$0xf]
    %v192 = vld [vmem:[#allocation3 + $0x20] sm:$0xf]
    %v193 = vld [vmem:[#allocation3 + $0x24] sm:$0xf]
    %v194 = vld [vmem:[#allocation3 + $0x28] sm:$0xf]
    %v195 = vld [vmem:[#allocation3 + $0x2c] sm:$0xf]
    %v196 = vld [vmem:[#allocation3 + $0x30] sm:$0xf]
    %v197 = vld [vmem:[#allocation3 + $0x34] sm:$0xf]
    %v198 = vld [vmem:[#allocation3 + $0x38] sm:$0xf]
    %v199 = vld [vmem:[#allocation3 + $0x3c] sm:$0xf]
    %v200 = vld [vmem:[#allocation3 + $0x40] sm:$0xf]
    %v201 = vld [vmem:[#allocation3 + $0x44] sm:$0xf]
    %v202 = vld [vmem:[#allocation3 + $0x48] sm:$0xf]
    %v203 = vld [vmem:[#allocation3 + $0x4c] sm:$0xf]
    %v204 = vld [vmem:[#allocation3 + $0x50] sm:$0xf]
    %v205 = vld [vmem:[#allocation3 + $0x54] sm:$0xf]
    %v206 = vld [vmem:[#allocation3 + $0x58] sm:$0xf]
    %v207 = vld [vmem:[#allocation3 + $0x5c] sm:$0xf]
    %v208 = vld [vmem:[#allocation3 + $0x60] sm:$0xf]
    %v209 = vld [vmem:[#allocation3 + $0x64] sm:$0xf]
    %v210 = vld [vmem:[#allocation3 + $0x68] sm:$0xf]
    %v211 = vld [vmem:[#allocation3 + $0x6c] sm:$0xf]
    %v212 = vld [vmem:[#allocation3 + $0x70] sm:$0xf]
    %v213 = vld [vmem:[#allocation3 + $0x74] sm:$0xf]
    %v214 = vld [vmem:[#allocation3 + $0x78] sm:$0xf]
    %v215 = vld [vmem:[#allocation3 + $0x7c] sm:$0xf]
    %v248 = vunpack.c.l.b16 %v184
    %v249 = vunpack.c.l.b16 %v185
    %v250 = vunpack.c.l.b16 %v186
    %v251 = vunpack.c.l.b16 %v187
    %v252 = vunpack.c.l.b16 %v188
    %v253 = vunpack.c.l.b16 %v189
    %v254 = vunpack.c.l.b16 %v190
    %v255 = vunpack.c.l.b16 %v191
    %v256 = vunpack.c.l.b16 %v192
    %v257 = vunpack.c.l.b16 %v193
    %v258 = vunpack.c.l.b16 %v194
    %v259 = vunpack.c.l.b16 %v195
    %v260 = vunpack.c.l.b16 %v196
    %v261 = vunpack.c.l.b16 %v197
    %v262 = vunpack.c.l.b16 %v198
    %v263 = vunpack.c.l.b16 %v199
    %v264 = vunpack.c.l.b16 %v200
    %v265 = vunpack.c.l.b16 %v201
    %v266 = vunpack.c.l.b16 %v202
    %v267 = vunpack.c.l.b16 %v203
    %v268 = vunpack.c.l.b16 %v204
    %v269 = vunpack.c.l.b16 %v205
    %v270 = vunpack.c.l.b16 %v206
    %v271 = vunpack.c.l.b16 %v207
    %v272 = vunpack.c.l.b16 %v208
    %v273 = vunpack.c.l.b16 %v209
    %v274 = vunpack.c.l.b16 %v210
    %v275 = vunpack.c.l.b16 %v211
    %v276 = vunpack.c.l.b16 %v212
    %v277 = vunpack.c.l.b16 %v213
    %v278 = vunpack.c.l.b16 %v214
    %v279 = vunpack.c.l.b16 %v215
    %v280 = vpack.c.b16 %v249, %v248
    %v281 = vpack.c.b16 %v251, %v250
    %v282 = vpack.c.b16 %v253, %v252
    %v283 = vpack.c.b16 %v255, %v254
    %v284 = vpack.c.b16 %v257, %v256
    %v285 = vpack.c.b16 %v259, %v258
    %v286 = vpack.c.b16 %v261, %v260
    %v287 = vpack.c.b16 %v263, %v262
    %v288 = vpack.c.b16 %v265, %v264
    %v289 = vpack.c.b16 %v267, %v266
    %v290 = vpack.c.b16 %v269, %v268
    %v291 = vpack.c.b16 %v271, %v270
    %v292 = vpack.c.b16 %v273, %v272
    %v293 = vpack.c.b16 %v275, %v274
    %v294 = vpack.c.b16 %v277, %v276
    %v295 = vpack.c.b16 %v279, %v278
    %312 = vmatpush.bf16.msra.mxu0 %v287
    %313 = vmatpush.bf16.msra.mxu0 %v286
    %314 = vmatpush.bf16.msra.mxu0 %v285
    %315 = vmatpush.bf16.msra.mxu0 %v284
    %316 = vmatpush.bf16.msra.mxu0 %v283
    %317 = vmatpush.bf16.msra.mxu0 %v282
    %318 = vmatpush.bf16.msra.mxu0 %v281
    %319 = vmatpush.bf16.msra.mxu0 %v280
    %320 = vmatmul.bf16.gmra.mxu0 %v182
    %v321 = vpop.f32.mrf.mxu0
    %v322 = vadd.f32 0.0, %v321
    %v323 = vpop.f32.mrf.mxu0
    %324 = vdwg.mxu0
    %325 = vmatpush.bf16.msra.mxu0 %v295
    %326 = vmatpush.bf16.msra.mxu0 %v294
    %327 = vmatpush.bf16.msra.mxu0 %v293
    %328 = vmatpush.bf16.msra.mxu0 %v292
    %329 = vmatpush.bf16.msra.mxu0 %v291
    %330 = vmatpush.bf16.msra.mxu0 %v290
    %331 = vmatpush.bf16.msra.mxu0 %v289
    %332 = vmatpush.bf16.msra.mxu0 %v288
    %333 = vmatmul.bf16.gmra.mxu0 %v183
    %v334 = vpop.f32.mrf.mxu0
    %v335 = vadd.f32 %v322, %v334
    %v336 = vpop.f32.mrf.mxu0
    %337 = vdwg.mxu0
    %v338 = vpack.c.bf16 %v335, %v335
    %v339 = vld [vmem:[%s4] sm:$0x1]
    %v341 = vpack.i.b16 %v339, %v339
    %v343 = vperm.slane %v341, 0
    %v344 = vunpack.c.l.bf16 %v338
    %v345 = vunpack.c.l.bf16 %v343
    %v346 = vadd.f32 %v344, %v345
    %v347 = vpack.c.bf16 %v346, %v346
    %v348 = vunpack.c.l.bf16 %v347
    %v349 = vmax.f32 %v348, 0.0
    %v350 = vpack.c.bf16 %v349, %v349
    %v351 = vld [vmem:[#allocation5] sm:$0xf]
    %v352 = vld [vmem:[#allocation5 + $0x4] sm:$0xf]
    %v353 = vld [vmem:[#allocation5 + $0x8] sm:$0xf]
    %v354 = vld [vmem:[#allocation5 + $0xc] sm:$0xf]
    %v355 = vld [vmem:[#allocation5 + $0x10] sm:$0xf]
    %v356 = vld [vmem:[#allocation5 + $0x14] sm:$0xf]
    %v357 = vld [vmem:[#allocation5 + $0x18] sm:$0xf]
    %v358 = vld [vmem:[#allocation5 + $0x1c] sm:$0xf]
    %v359 = vld [vmem:[#allocation5 + $0x20] sm:$0xf]
    %v360 = vld [vmem:[#allocation5 + $0x24] sm:$0xf]
    %v361 = vld [vmem:[#allocation5 + $0x28] sm:$0xf]
    %v362 = vld [vmem:[#allocation5 + $0x2c] sm:$0xf]
    %v363 = vld [vmem:[#allocation5 + $0x30] sm:$0xf]
    %v364 = vld [vmem:[#allocation5 + $0x34] sm:$0xf]
    %v365 = vld [vmem:[#allocation5 + $0x38] sm:$0xf]
    %v366 = vld [vmem:[#allocation5 + $0x3c] sm:$0xf]
    %v383 = vunpack.c.l.b16 %v351
    %v384 = vunpack.c.l.b16 %v352
    %v385 = vunpack.c.l.b16 %v353
    %v386 = vunpack.c.l.b16 %v354
    %v387 = vunpack.c.l.b16 %v355
    %v388 = vunpack.c.l.b16 %v356
    %v389 = vunpack.c.l.b16 %v357
    %v390 = vunpack.c.l.b16 %v358
    %v391 = vunpack.c.l.b16 %v359
    %v392 = vunpack.c.l.b16 %v360
    %v393 = vunpack.c.l.b16 %v361
    %v394 = vunpack.c.l.b16 %v362
    %v395 = vunpack.c.l.b16 %v363
    %v396 = vunpack.c.l.b16 %v364
    %v397 = vunpack.c.l.b16 %v365
    %v398 = vunpack.c.l.b16 %v366
    %v399 = vpack.c.b16 %v384, %v383
    %v400 = vpack.c.b16 %v386, %v385
    %v401 = vpack.c.b16 %v388, %v387
    %v402 = vpack.c.b16 %v390, %v389
    %v403 = vpack.c.b16 %v392, %v391
    %v404 = vpack.c.b16 %v394, %v393
    %v405 = vpack.c.b16 %v396, %v395
    %v406 = vpack.c.b16 %v398, %v397
    %415 = vmatpush.bf16.msra.mxu0 %v406
    %416 = vmatpush.bf16.msra.mxu0 %v405
    %417 = vmatpush.bf16.msra.mxu0 %v404
    %418 = vmatpush.bf16.msra.mxu0 %v403
    %419 = vmatpush.bf16.msra.mxu0 %v402
    %420 = vmatpush.bf16.msra.mxu0 %v401
    %421 = vmatpush.bf16.msra.mxu0 %v400
    %422 = vmatpush.bf16.msra.mxu0 %v399
    %423 = vmatmul.bf16.gmra.mxu0 %v350
    %v424 = vpop.f32.mrf.mxu0
    %v425 = vadd.f32 0.0, %v424
    %v426 = vpop.f32.mrf.mxu0
    %427 = vdwg.mxu0
    %v428 = vpack.c.bf16 %v425, %v425
    %v429 = vld [vmem:[%s6] sm:$0x1]
    %v431 = vpack.i.b16 %v429, %v429
    %v433 = vperm.slane %v431, 0
    %v434 = vunpack.c.l.bf16 %v428
    %v435 = vunpack.c.l.bf16 %v433
    %v436 = vadd.f32 %v434, %v435
    %v437 = vpack.c.bf16 %v436, %v436
    %v438 = vunpack.c.l.bf16 %v437
    %v439 = vmax.f32 %v438, 0.0
    %v440 = vpack.c.bf16 %v439, %v439
    %v441 = vld [vmem:[%s7] sm:$0xf]
    %v442 = vld [vmem:[%s7 + $0x4] sm:$0xf]
    %v443 = vld [vmem:[%s7 + $0x8] sm:$0xf]
    %v444 = vld [vmem:[%s7 + $0xc] sm:$0xf]
    %v445 = vld [vmem:[%s7 + $0x10] sm:$0xf]
    %v446 = vld [vmem:[%s7 + $0x14] sm:$0xf]
    %v447 = vld [vmem:[%s7 + $0x18] sm:$0xf]
    %v448 = vld [vmem:[%s7 + $0x1c] sm:$0xf]
    %v449 = vld [vmem:[%s7 + $0x20] sm:$0xf]
    %v450 = vld [vmem:[%s7 + $0x24] sm:$0xf]
    %v451 = vld [vmem:[%s7 + $0x28] sm:$0xf]
    %v452 = vld [vmem:[%s7 + $0x2c] sm:$0xf]
    %v453 = vld [vmem:[%s7 + $0x30] sm:$0xf]
    %v454 = vld [vmem:[%s7 + $0x34] sm:$0xf]
    %v455 = vld [vmem:[%s7 + $0x38] sm:$0xf]
    %v456 = vld [vmem:[%s7 + $0x3c] sm:$0xf]
    %v457 = vld [vmem:[#allocation2] sm:$0x1]
    %v459 = vperm.slane %v457, 0
    %v477 = vunpack.c.l.b16 %v441
    %v478 = vunpack.c.l.b16 %v442
    %v479 = vunpack.c.l.b16 %v443
    %v480 = vunpack.c.l.b16 %v444
    %v481 = vunpack.c.l.b16 %v445
    %v482 = vunpack.c.l.b16 %v446
    %v483 = vunpack.c.l.b16 %v447
    %v484 = vunpack.c.l.b16 %v448
    %v485 = vunpack.c.l.b16 %v449
    %v486 = vunpack.c.l.b16 %v450
    %v487 = vunpack.c.l.b16 %v451
    %v488 = vunpack.c.l.b16 %v452
    %v489 = vunpack.c.l.b16 %v453
    %v490 = vunpack.c.l.b16 %v454
    %v491 = vunpack.c.l.b16 %v455
    %v492 = vunpack.c.l.b16 %v456
    %v493 = vpack.c.b16 %v478, %v477
    %v494 = vpack.c.b16 %v480, %v479
    %v495 = vpack.c.b16 %v482, %v481
    %v496 = vpack.c.b16 %v484, %v483
    %v497 = vpack.c.b16 %v486, %v485
    %v498 = vpack.c.b16 %v488, %v487
    %v499 = vpack.c.b16 %v490, %v489
    %v500 = vpack.c.b16 %v492, %v491
    %509 = vmatpush.bf16.msra.mxu0 %v500
    %510 = vmatpush.bf16.msra.mxu0 %v499
    %511 = vmatpush.bf16.msra.mxu0 %v498
    %512 = vmatpush.bf16.msra.mxu0 %v497
    %513 = vmatpush.bf16.msra.mxu0 %v496
    %514 = vmatpush.bf16.msra.mxu0 %v495
    %515 = vmatpush.bf16.msra.mxu0 %v494
    %516 = vmatpush.bf16.msra.mxu0 %v493
    %517 = vmatmul.bf16.gmra.mxu0 %v440
    %v518 = vpop.f32.mrf.mxu0
    %v519 = vadd.f32 %v459, %v518
    %v520 = vpop.f32.mrf.mxu0
    %521 = vdwg.mxu0
    %vm522 = vcmask 7168
    %523 = vst.msk [vmem:[%s9] sm:$0xff] %vm522, %v519
    // Predicated region
    $region46: #{interaction_model_forward.1} parent=1 // pred_check
      _
    $region47: #{interaction_model_forward.1} parent=1 // pred_check_branch
      %525 = sbr.rel (0) target = $region49
    $region48: #{interaction_model_forward.1} parent=1 // pred_region
      _
    $region49: #{interaction_model_forward.1} parent=1 // pred_fallthru
      _
    // Predicated region
    $region50: #{interaction_model_forward.1} parent=1 // pred_check
      _
    $region51: #{interaction_model_forward.1} parent=1 // pred_check_branch
      %527 = sbr.rel (0) target = $region53
    $region52: #{interaction_model_forward.1} parent=1 // pred_region
      _
    $region53: #{interaction_model_forward.1} parent=1 // pred_fallthru
      _
    %528 = vsyncpa [#allocation4], 1
    %529 = vsyncpa [#allocation6], 1

</llo_original>
